<compile_context>
chip_gen: v7x
topology: tpu7x:2x2x1
jax: 0.10.0
libtpu: 0.0.40
codegen_flags: <defaults>
</compile_context>

<pallas_src>
import functools

import jax
import jax.numpy as jnp
from jax.experimental import pallas as pl
from jax.experimental.pallas import tpu as pltpu


def _round_up(x, m):
    return (x + m - 1) // m * m


def _choose_block_b(batch, feat, itemsize, block_b=None):
    """Pick the batch tile: big enough to amortize per-step overhead, small
    enough to fit comfortably in VMEM with double buffering, and aligned to
    the dtype's sublane tiling."""
    sub = {4: 8, 2: 16, 1: 32}.get(itemsize, 8)
    if batch <= sub:
        return batch                      # block == full batch dim (always legal)
    if block_b is None:
        # ~4 MiB of combined anchor/positive/negative bytes per grid step
        # (~8 MiB double-buffered): >=2 MiB target even at v7x HBM bandwidth,
        # << 64 MiB v7x VMEM.
        target_step_bytes = 4 << 20
        block_b = target_step_bytes // (3 * feat * itemsize)
    tb = max(sub, (int(block_b) // sub) * sub)
    tb = min(tb, (batch // sub) * sub)    # never a block larger than the array
    return int(tb)


def _triplet_cos_loss_kernel(a_ref, p_ref, n_ref, out_ref, acc_ref, *,
                             margin, batch, eps, tb,
                             num_tiles, inner_tiles, num_cores):
    c = pl.program_id(0)          # "parallel" axis (per-core)
    i = pl.program_id(1)          # "arbitrary" reduction axis
    tile = c * inner_tiles + i    # global batch-tile index

    @pl.when(i == 0)
    def _init():
        acc_ref[...] = jnp.zeros_like(acc_ref)

    a = a_ref[...].astype(jnp.float32)
    p = p_ref[...].astype(jnp.float32)
    n = n_ref[...].astype(jnp.float32)

    # Per-sample reductions over the feature (lane) axis -> (tb, 1).
    aa = jnp.sum(a * a, axis=-1, keepdims=True)
    pp = jnp.sum(p * p, axis=-1, keepdims=True)
    nn = jnp.sum(n * n, axis=-1, keepdims=True)
    ap = jnp.sum(a * p, axis=-1, keepdims=True)
    an = jnp.sum(a * n, axis=-1, keepdims=True)

    # sim = <x,y> / max(||x||*||y||, eps) == <x,y> * rsqrt(max(||x||^2*||y||^2, eps^2))
    eps2 = eps * eps
    sim_p = ap * jax.lax.rsqrt(jnp.maximum(aa * pp, eps2))
    sim_n = an * jax.lax.rsqrt(jnp.maximum(aa * nn, eps2))

    # (1 - sim_p) - (1 - sim_n) + margin == sim_n - sim_p + margin
    losses = jnp.maximum(sim_n - sim_p + margin, 0.0)        # (tb, 1)

    ragged = (batch % tb) != 0                   # static: last tile partial?
    phantom = (num_cores * inner_tiles) != num_tiles  # static: extra grid step?
    last = num_tiles - 1

    def _acc_full():
        acc_ref[...] += jnp.sum(losses, axis=0, keepdims=True)

    def _acc_masked():
        row = tile * tb + jax.lax.broadcasted_iota(jnp.int32, losses.shape, 0)
        masked = jnp.where(row < batch, losses, 0.0)   # select: OOB rows -> 0
        acc_ref[...] += jnp.sum(masked, axis=0, keepdims=True)

    if ragged and phantom:
        pl.when(tile == last)(_acc_masked)
        pl.when(tile < last)(_acc_full)          # phantom step (tile >= num_tiles) skipped
    elif ragged:
        pl.when(tile == last)(_acc_masked)
        pl.when(tile != last)(_acc_full)
    elif phantom:
        pl.when(tile < num_tiles)(_acc_full)
    else:
        _acc_full()

    @pl.when(i == inner_tiles - 1)
    def _finish():
        out_ref[...] = jnp.broadcast_to(acc_ref[...], out_ref.shape)


def triplet_cos_loss(anchor, positive, negative, margin,
                     *, eps=1e-8, block_b=None):
    """Pallas TPU implementation of TripletCosLoss.forward (size_average=True)."""
    assert anchor.shape == positive.shape == negative.shape
    B, D = anchor.shape
    itemsize = anchor.dtype.itemsize

    tb = _choose_block_b(B, D, itemsize, block_b)
    num_tiles = pl.cdiv(B, tb)
    num_cores = 2 if num_tiles >= 2 else 1       # v7x: 2 TCs; neutral on v5e/v6e
    inner_tiles = pl.cdiv(num_tiles, num_cores)

    if num_cores * inner_tiles == num_tiles:
        in_index = lambda c, i: (c * inner_tiles + i, 0)
    else:
        # Clamp the (single) phantom step to the last valid tile; its
        # contribution is skipped inside the kernel.
        in_index = lambda c, i: (jnp.minimum(c * inner_tiles + i, num_tiles - 1), 0)

    in_spec = pl.BlockSpec((tb, D), in_index)
    out_spec = pl.BlockSpec((1, 8, 128), lambda c, i: (c, 0, 0))

    # Double-buffered input bytes per core + small output/scratch.
    needed = 3 * 2 * tb * D * itemsize + 2 * (8 * 128 * 4) + 4096
    vmem_limit = int(min(max(needed + (4 << 20), 32 << 20), 48 << 20))

    kernel = functools.partial(
        _triplet_cos_loss_kernel,
        margin=float(margin), batch=int(B), eps=float(eps), tb=int(tb),
        num_tiles=int(num_tiles), inner_tiles=int(inner_tiles),
        num_cores=int(num_cores))

    partials = pl.pallas_call(
        kernel,
        out_shape=jax.ShapeDtypeStruct((num_cores, 8, 128), jnp.float32),
        grid=(num_cores, inner_tiles),
        in_specs=[in_spec, in_spec, in_spec],
        out_specs=out_spec,
        scratch_shapes=[pltpu.VMEM((1, 1), jnp.float32)],
        compiler_params=pltpu.CompilerParams(
            dimension_semantics=("parallel", "arbitrary"),
            vmem_limit_bytes=vmem_limit,
        ),
    )(anchor, positive, negative)

    # Tiny cross-core reduction + mean in plain XLA.
    return jnp.sum(partials[:, 0, 0]) / B


def _reference(anchor, positive, negative, margin, eps=1e-8):
    a = anchor.astype(jnp.float32)
    p = positive.astype(jnp.float32)
    n = negative.astype(jnp.float32)

    def cos(x, y):
        num = jnp.sum(x * y, axis=1)
        den = jnp.maximum(jnp.linalg.norm(x, axis=1) * jnp.linalg.norm(y, axis=1),
                          eps)
        return num / den

    d_pos = 1.0 - cos(a, p)
    d_neg = 1.0 - cos(a, n)
    return jnp.mean(jnp.maximum(d_pos - d_neg + margin, 0.0))


if __name__ == "__main__":
    key = jax.random.PRNGKey(0)
    margin = 0.2
    ks = jax.random.split(key, 12)

    # 1) Tiny batch: single tile, single core.
    B, D = 8, 128
    a = jax.random.normal(ks[0], (B, D), jnp.float32)
    p = jax.random.normal(ks[1], (B, D), jnp.float32)
    n = jax.random.normal(ks[2], (B, D), jnp.float32)
    loss = triplet_cos_loss(a, p, n, margin)
    jax.block_until_ready(loss)
    ref = _reference(a, p, n, margin)
    assert jnp.allclose(loss, ref, atol=1e-5, rtol=1e-4), (loss, ref)

    # 2) Auto tile, ragged batch (300 % 296 != 0): 2 tiles -> both cores, masked tail.
    B2, D2 = 300, 128
    a2 = jax.random.normal(ks[3], (B2, D2), jnp.float32)
    p2 = jax.random.normal(ks[4], (B2, D2), jnp.float32)
    n2 = jax.random.normal(ks[5], (B2, D2), jnp.float32)
    loss2 = triplet_cos_loss(a2, p2, n2, margin)
    jax.block_until_ready(loss2)
    ref2 = _reference(a2, p2, n2, margin)
    assert jnp.allclose(loss2, ref2, atol=1e-5, rtol=1e-4), (loss2, ref2)

    # 3) Small explicit tile: 7 tiles -> ragged last tile AND a phantom step on core 1.
    loss3 = triplet_cos_loss(a2, p2, n2, margin, block_b=72)
    jax.block_until_ready(loss3)
    assert jnp.allclose(loss3, ref2, atol=1e-5, rtol=1e-4), (loss3, ref2)

    # 4) Native bf16 streaming, multi-tile, two cores.
    B4, D4 = 64, 256
    a4 = jax.random.normal(ks[6], (B4, D4), jnp.float32).astype(jnp.bfloat16)
    p4 = jax.random.normal(ks[7], (B4, D4), jnp.float32).astype(jnp.bfloat16)
    n4 = jax.random.normal(ks[8], (B4, D4), jnp.float32).astype(jnp.bfloat16)
    loss4 = triplet_cos_loss(a4, p4, n4, margin, block_b=16)
    jax.block_until_ready(loss4)
    ref4 = _reference(a4, p4, n4, margin)
    assert jnp.allclose(loss4, ref4, atol=1e-5, rtol=1e-4), (loss4, ref4)

    print("KERNEL_OK")
</pallas_src>

<mosaic_0001>
module attributes {stable_mosaic.version = 11 : i64} {
  func.func @_triplet_cos_loss_kernel(%arg0: i32, %arg1: i32, %arg2: memref<8x128xf32, #tpu.memory_space<vmem>>, %arg3: memref<8x128xf32, #tpu.memory_space<vmem>>, %arg4: memref<8x128xf32, #tpu.memory_space<vmem>>, %arg5: memref<1x8x128xf32, #tpu.memory_space<vmem>>, %arg6: memref<1x1xf32, #tpu.memory_space<vmem>>) attributes {dimension_semantics = [#tpu.dimension_semantics<parallel>, #tpu.dimension_semantics<arbitrary>], iteration_bounds = array<i64: 1, 1>, scalar_prefetch = 0 : i64, scratch_operands = 1 : i64, tpu.core_type = #tpu.core_type<tc>, window_params = [{transform_indices = @transform_0, window_bounds = array<i64: 8, 128>}, {transform_indices = @transform_1, window_bounds = array<i64: 8, 128>}, {transform_indices = @transform_2, window_bounds = array<i64: 8, 128>}, {transform_indices = @transform_3, window_bounds = array<i64: 1, 8, 128>}]} {
    %c0_i32 = arith.constant 0 : i32
    %0 = arith.cmpi eq, %arg1, %c0_i32 : i32
    %1 = arith.extui %0 : i1 to i32
    %c0_i32_0 = arith.constant 0 : i32
    %2 = arith.cmpi ne, %1, %c0_i32_0 : i32
    scf.if %2 {
      %cst_21 = arith.constant 0.000000e+00 : f32
      %44 = vector.broadcast %cst_21 : f32 to vector<1x1xf32>
      %c0_22 = arith.constant 0 : index
      %c0_23 = arith.constant 0 : index
      %45 = vector.load %arg6[%c0_22, %c0_23] : memref<1x1xf32, #tpu.memory_space<vmem>>, vector<1x1xf32>
      tpu.vector_store %arg6[%c0_22, %c0_23], %44 {strides = array<i32>} : memref<1x1xf32, #tpu.memory_space<vmem>>, vector<1x1xf32>,
    } else {
    }
    %c0 = arith.constant 0 : index
    %c0_1 = arith.constant 0 : index
    %3 = vector.load %arg2[%c0, %c0_1] : memref<8x128xf32, #tpu.memory_space<vmem>>, vector<8x128xf32>
    %c0_2 = arith.constant 0 : index
    %c0_3 = arith.constant 0 : index
    %4 = vector.load %arg3[%c0_2, %c0_3] : memref<8x128xf32, #tpu.memory_space<vmem>>, vector<8x128xf32>
    %c0_4 = arith.constant 0 : index
    %c0_5 = arith.constant 0 : index
    %5 = vector.load %arg4[%c0_4, %c0_5] : memref<8x128xf32, #tpu.memory_space<vmem>>, vector<8x128xf32>
    %6 = arith.mulf %3, %3 : vector<8x128xf32>
    %cst = arith.constant dense<0.000000e+00> : vector<8xf32>
    %7 = vector.multi_reduction <add>, %6, %cst [1] : vector<8x128xf32> to vector<8xf32>
    %8 = vector.shape_cast %7 : vector<8xf32> to vector<8x1xf32>
    %9 = arith.mulf %4, %4 : vector<8x128xf32>
    %cst_6 = arith.constant dense<0.000000e+00> : vector<8xf32>
    %10 = vector.multi_reduction <add>, %9, %cst_6 [1] : vector<8x128xf32> to vector<8xf32>
    %11 = vector.shape_cast %10 : vector<8xf32> to vector<8x1xf32>
    %12 = arith.mulf %5, %5 : vector<8x128xf32>
    %cst_7 = arith.constant dense<0.000000e+00> : vector<8xf32>
    %13 = vector.multi_reduction <add>, %12, %cst_7 [1] : vector<8x128xf32> to vector<8xf32>
    %14 = vector.shape_cast %13 : vector<8xf32> to vector<8x1xf32>
    %15 = arith.mulf %3, %4 : vector<8x128xf32>
    %cst_8 = arith.constant dense<0.000000e+00> : vector<8xf32>
    %16 = vector.multi_reduction <add>, %15, %cst_8 [1] : vector<8x128xf32> to vector<8xf32>
    %17 = vector.shape_cast %16 : vector<8xf32> to vector<8x1xf32>
    %18 = arith.mulf %3, %5 : vector<8x128xf32>
    %cst_9 = arith.constant dense<0.000000e+00> : vector<8xf32>
    %19 = vector.multi_reduction <add>, %18, %cst_9 [1] : vector<8x128xf32> to vector<8xf32>
    %20 = vector.shape_cast %19 : vector<8xf32> to vector<8x1xf32>
    %21 = arith.mulf %8, %11 : vector<8x1xf32>
    %cst_10 = arith.constant 1.000000e-16 : f32
    %22 = vector.broadcast %cst_10 : f32 to vector<8x1xf32>
    %23 = arith.maximumf %21, %22 : vector<8x1xf32>
    %24 = math.rsqrt %23 : vector<8x1xf32>
    %25 = arith.mulf %17, %24 : vector<8x1xf32>
    %26 = arith.mulf %8, %14 : vector<8x1xf32>
    %cst_11 = arith.constant 1.000000e-16 : f32
    %27 = vector.broadcast %cst_11 : f32 to vector<8x1xf32>
    %28 = arith.maximumf %26, %27 : vector<8x1xf32>
    %29 = math.rsqrt %28 : vector<8x1xf32>
    %30 = arith.mulf %20, %29 : vector<8x1xf32>
    %31 = arith.subf %30, %25 : vector<8x1xf32>
    %cst_12 = arith.constant 2.000000e-01 : f32
    %32 = vector.broadcast %cst_12 : f32 to vector<8x1xf32>
    %33 = arith.addf %31, %32 : vector<8x1xf32>
    %cst_13 = arith.constant 0.000000e+00 : f32
    %34 = vector.broadcast %cst_13 : f32 to vector<8x1xf32>
    %35 = arith.maximumf %33, %34 : vector<8x1xf32>
    %c0_14 = arith.constant 0 : index
    %c0_15 = arith.constant 0 : index
    %36 = vector.load %arg6[%c0_14, %c0_15] : memref<1x1xf32, #tpu.memory_space<vmem>>, vector<1x1xf32>
    %cst_16 = arith.constant dense<0.000000e+00> : vector<1xf32>
    %37 = vector.multi_reduction <add>, %35, %cst_16 [0] : vector<8x1xf32> to vector<1xf32>
    %38 = vector.shape_cast %37 : vector<1xf32> to vector<1x1xf32>
    %39 = arith.addf %36, %38 : vector<1x1xf32>
    %c0_17 = arith.constant 0 : index
    %c0_18 = arith.constant 0 : index
    %40 = vector.load %arg6[%c0_17, %c0_18] : memref<1x1xf32, #tpu.memory_space<vmem>>, vector<1x1xf32>
    tpu.vector_store %arg6[%c0_17, %c0_18], %39 {strides = array<i32>} : memref<1x1xf32, #tpu.memory_space<vmem>>, vector<1x1xf32>,
    %c0_i32_19 = arith.constant 0 : i32
    %41 = arith.cmpi eq, %arg1, %c0_i32_19 : i32
    %42 = arith.extui %41 : i1 to i32
    %c0_i32_20 = arith.constant 0 : i32
    %43 = arith.cmpi ne, %42, %c0_i32_20 : i32
    scf.if %43 {
      %c0_21 = arith.constant 0 : index
      %c0_22 = arith.constant 0 : index
      %44 = vector.load %arg6[%c0_21, %c0_22] : memref<1x1xf32, #tpu.memory_space<vmem>>, vector<1x1xf32>
      %45 = vector.shape_cast %44 : vector<1x1xf32> to vector<1x1x1xf32>
      %46 = vector.broadcast %45 : vector<1x1x1xf32> to vector<1x8x128xf32>
      %c0_23 = arith.constant 0 : index
      %c0_24 = arith.constant 0 : index
      %c0_25 = arith.constant 0 : index
      %47 = vector.load %arg5[%c0_23, %c0_24, %c0_25] : memref<1x8x128xf32, #tpu.memory_space<vmem>>, vector<1x8x128xf32>
      tpu.vector_store %arg5[%c0_23, %c0_24, %c0_25], %46 {strides = array<i32>} : memref<1x8x128xf32, #tpu.memory_space<vmem>>, vector<1x8x128xf32>,
    } else {
    }
    return
  }
  func.func @transform_0(%arg0: i32, %arg1: i32) -> (i32, i32) {
    %c1_i32 = arith.constant 1 : i32
    %0 = arith.muli %arg0, %c1_i32 : i32
    %1 = arith.addi %0, %arg1 : i32
    %c0_i32 = arith.constant 0 : i32
    %c0_i32_0 = arith.constant 0 : i32
    return %1, %c0_i32 : i32, i32
  }
  func.func @transform_1(%arg0: i32, %arg1: i32) -> (i32, i32) {
    %c1_i32 = arith.constant 1 : i32
    %0 = arith.muli %arg0, %c1_i32 : i32
    %1 = arith.addi %0, %arg1 : i32
    %c0_i32 = arith.constant 0 : i32
    %c0_i32_0 = arith.constant 0 : i32
    return %1, %c0_i32 : i32, i32
  }
  func.func @transform_2(%arg0: i32, %arg1: i32) -> (i32, i32) {
    %c1_i32 = arith.constant 1 : i32
    %0 = arith.muli %arg0, %c1_i32 : i32
    %1 = arith.addi %0, %arg1 : i32
    %c0_i32 = arith.constant 0 : i32
    %c0_i32_0 = arith.constant 0 : i32
    return %1, %c0_i32 : i32, i32
  }
  func.func @transform_3(%arg0: i32, %arg1: i32) -> (i32, i32, i32) {
    %c0_i32 = arith.constant 0 : i32
    %c0_i32_0 = arith.constant 0 : i32
    %c0_i32_1 = arith.constant 0 : i32
    return %arg0, %c0_i32, %c0_i32_0 : i32, i32, i32
  }
}

</mosaic_0001>

<llo_original>
// kernel: tpu_custom_call.1
$region0: #{tpu_custom_call.1}
  #allocation0 [shape = 'u32[]', space=smem, size = 0x4, offset = 0x4, fixed_abs, tag = 'smem constant byte address 0x4 - core index']
  #allocation1 [shape = 'u32[144,128]{1,0:T(1,128)}', space=vmem, size = 0x12000, scoped, tag = 'internal scratch']
  #allocation2 [shape = 'f32[1,1]{1,0:T(1,128)}', space=vmem, size = 0x200, scoped, tag = 'scratch operand']
  %s0 = inlined_call_operand.hbm [shape: f32[8,128], index: 0, kind: input, shape index: {}]
  %s1 = inlined_call_operand.hbm [shape: f32[8,128], index: 1, kind: input, shape index: {}]
  %s2 = inlined_call_operand.hbm [shape: f32[8,128], index: 2, kind: input, shape index: {}]
  %s3 = inlined_call_operand.hbm [shape: f32[1,8,128], index: 3, kind: output, shape index: {}]
  %s4 = sld [smem:[#allocation0]]
  $region42: #{tpu_custom_call.1} parent=0
    _
  %s6 = ssub.s32 1, %s4
  %s7 = scalar_select 0, %s6, %s4
  $region1: #{tpu_custom_call.1} parent=0
    #allocation3 [shape = 'u8[4096]{0}', space=vmem, size = 0x1000, scoped, tag = 'input window, operand 0, single buffered']
    #allocation4 [shape = 's32[1]{0}', space=sflag, size = 0x4, scoped, tag = 'scoped memory for tpu_custom_call.1']
    #allocation5 [shape = 's32[1]{0}', space=sflag, size = 0x4, scoped, tag = 'scoped memory for tpu_custom_call.1']
    #allocation6 [shape = 'u8[4096]{0}', space=vmem, size = 0x1000, scoped, tag = 'input window, operand 1, single buffered']
    #allocation7 [shape = 's32[1]{0}', space=sflag, size = 0x4, scoped, tag = 'scoped memory for tpu_custom_call.1']
    #allocation8 [shape = 'u8[4096]{0}', space=vmem, size = 0x1000, scoped, tag = 'input window, operand 2, single buffered']
    #allocation9 [shape = 'u8[4096]{0}', space=vmem, size = 0x1000, scoped, tag = 'output window, operand 0, single buffered']
    %8 = vsyncpa [#allocation4], 0
    %9 = vsyncpa [#allocation7], 0
    %10 = vsyncpa [#allocation5], 0
    // Predicated region
    $region2: #{tpu_custom_call.1} parent=1 // pred_check
      _
    $region3: #{tpu_custom_call.1} parent=1 // pred_check_branch
      %12 = sbr.rel (0) target = $region5
    $region4: #{tpu_custom_call.1} parent=1 // pred_region
      %s13 = sadd.s32 0, 0
      %s15 = ssub.s32 128, 128
      %16 = vsyncadd [#allocation4], %s15
      %s17 = smul.addr %s13, 128
      %s18 = scalar_lea.hbm %s0, %s17
      %s20 = sshll.u32 [#allocation3], 4
      %s21 = int_to_ptr.vmem [resolvable:$true] %s20
      %23 = dma.hbm_to_vmem [thread:$0]  %s18, 128, %s21, [#allocation4]
    $region5: #{tpu_custom_call.1} parent=1 // pred_fallthru
      _
    // Predicated region
    $region6: #{tpu_custom_call.1} parent=1 // pred_check
      _
    $region7: #{tpu_custom_call.1} parent=1 // pred_check_branch
      %25 = sbr.rel (0) target = $region9
    $region8: #{tpu_custom_call.1} parent=1 // pred_region
      %s26 = sadd.s32 0, 0
      %s28 = ssub.s32 128, 128
      %29 = vsyncadd [#allocation7], %s28
      %s30 = smul.addr %s26, 128
      %s31 = scalar_lea.hbm %s1, %s30
      %s33 = sshll.u32 [#allocation6], 4
      %s34 = int_to_ptr.vmem [resolvable:$true] %s33
      %36 = dma.hbm_to_vmem [thread:$0]  %s31, 128, %s34, [#allocation7]
    $region9: #{tpu_custom_call.1} parent=1 // pred_fallthru
      _
    // Predicated region
    $region10: #{tpu_custom_call.1} parent=1 // pred_check
      _
    $region11: #{tpu_custom_call.1} parent=1 // pred_check_branch
      %38 = sbr.rel (0) target = $region13
    $region12: #{tpu_custom_call.1} parent=1 // pred_region
      %s39 = sadd.s32 0, 0
      %s41 = ssub.s32 128, 128
      %42 = vsyncadd [#allocation7], %s41
      %s43 = smul.addr %s39, 128
      %s44 = scalar_lea.hbm %s2, %s43
      %s46 = sshll.u32 [#allocation8], 4
      %s47 = int_to_ptr.vmem [resolvable:$true] %s46
      %49 = dma.hbm_to_vmem [thread:$0]  %s44, 128, %s47, [#allocation7]
    $region13: #{tpu_custom_call.1} parent=1 // pred_fallthru
      _
    // Predicated region
    $region14: #{tpu_custom_call.1} parent=1 // pred_check
      _
    $region15: #{tpu_custom_call.1} parent=1 // pred_check_branch
      %51 = sbr.rel (0) target = $region17
    $region16: #{tpu_custom_call.1} parent=1 // pred_region
      %52 = dma.done [#allocation4], 128
    $region17: #{tpu_custom_call.1} parent=1 // pred_fallthru
      _
    // Predicated region
    $region18: #{tpu_custom_call.1} parent=1 // pred_check
      _
    $region19: #{tpu_custom_call.1} parent=1 // pred_check_branch
      %54 = sbr.rel (0) target = $region21
    $region20: #{tpu_custom_call.1} parent=1 // pred_region
      %55 = dma.done [#allocation7], 128
    $region21: #{tpu_custom_call.1} parent=1 // pred_fallthru
      _
    // Predicated region
    $region22: #{tpu_custom_call.1} parent=1 // pred_check
      _
    $region23: #{tpu_custom_call.1} parent=1 // pred_check_branch
      %57 = sbr.rel (0) target = $region25
    $region24: #{tpu_custom_call.1} parent=1 // pred_region
      %58 = dma.done [#allocation7], 128
    $region25: #{tpu_custom_call.1} parent=1 // pred_fallthru
      _
    %s59 = sadd.s32 0, 0
    %s60 = sadd.s32 0, 0
    %s61 = sadd.s32 0, 0
    %p62 = scmp.eq.s32.totalorder 0, 0
    // Predicated region
    $region26: #{tpu_custom_call.1} parent=1 // pred_check
      %p63 = pneg %p62
    $region27: #{tpu_custom_call.1} parent=1 // pred_check_branch
      %65 = sbr.rel (%p63) target = $region29
    $region28: #{tpu_custom_call.1} parent=1 // pred_region
      %vm66 = vcmask 0
      %67 = vst.msk [vmem:[#allocation2] sm:$0x1] %vm66, 0.0
    $region29: #{tpu_custom_call.1} parent=1 // pred_fallthru
      _
    %v68 = vld [vmem:[#allocation3] sm:$0xff]
    %v69 = vld [vmem:[#allocation6] sm:$0xff]
    %v70 = vld [vmem:[#allocation8] sm:$0xff]
    %v71 = vmul.f32 %v68, %v68
    %72 = vadd.xlane.f32.xlu0 %v71
    %v73 = vpop.xlane.xlu0 %72
    %v74 = vmul.f32 %v69, %v69
    %75 = vadd.xlane.f32.xlu0 %v74
    %v76 = vpop.xlane.xlu0 %75
    %v77 = vmul.f32 %v70, %v70
    %78 = vadd.xlane.f32.xlu0 %v77
    %v79 = vpop.xlane.xlu0 %78
    %v80 = vmul.f32 %v68, %v69
    %81 = vadd.xlane.f32.xlu0 %v80
    %v82 = vpop.xlane.xlu0 %81
    %v83 = vmul.f32 %v68, %v70
    %84 = vadd.xlane.f32.xlu0 %v83
    %v85 = vpop.xlane.xlu0 %84
    %v86 = vmul.f32 %v73, %v76
    %v87 = vmax.f32 %v86, 1e-16
    %v88 = vrsqrt.pop %v87
    %v89 = vmul.f32 %v82, %v88
    %v90 = vmul.f32 %v73, %v79
    %v91 = vmax.f32 %v90, 1e-16
    %v92 = vrsqrt.pop %v91
    %v93 = vmul.f32 %v85, %v92
    %v94 = vsub.f32 %v93, %v89
    %v95 = vadd.f32 %v94, 0.2
    %v96 = vmax.f32 %v95, 0.0
    %v97 = vld [vmem:[#allocation2] sm:$0x1]
    %v98 = vrot.slane %v96, 4
    %v99 = vadd.f32 %v96, %v98
    %v100 = vrot.slane %v99, 2
    %v101 = vadd.f32 %v99, %v100
    %v102 = vrot.slane %v101, 1
    %v103 = vadd.f32 %v101, %v102
    %v104 = vadd.f32 %v97, %v103
    %vm105 = vcmask 0
    %106 = vst.msk [vmem:[#allocation2] sm:$0x1] %vm105, %v104
    // Predicated region
    $region30: #{tpu_custom_call.1} parent=1 // pred_check
      %p107 = pneg %p62
    $region31: #{tpu_custom_call.1} parent=1 // pred_check_branch
      %109 = sbr.rel (%p107) target = $region33
    $region32: #{tpu_custom_call.1} parent=1 // pred_region
      %v110 = vld [vmem:[#allocation2] sm:$0x1]
      %v112 = vlaneseq
      %v113 = vshrl.u32 %v112, 7
      %v114 = vsub.s32 0, %v113
      %v115 = vrot.slane %v110, %v114
      %116 = vset.pattern.permute.xlu0 0
      %117 = vperm.xlu0 %116, %v115
      %v118 = vpop.permute.xlu0 %117
      %120 = vst [vmem:[#allocation9] sm:$0xff] %v118
    $region33: #{tpu_custom_call.1} parent=1 // pred_fallthru
      _
    // Predicated region
    $region34: #{tpu_custom_call.1} parent=1 // pred_check
      _
    $region35: #{tpu_custom_call.1} parent=1 // pred_check_branch
      %122 = sbr.rel (0) target = $region37
    $region36: #{tpu_custom_call.1} parent=1 // pred_region
      %s124 = ssub.s32 128, 128
      %125 = vsyncadd [#allocation5], %s124
      %s127 = sshll.u32 [#allocation9], 4
      %s128 = int_to_ptr.vmem [resolvable:$true] %s127
      %130 = dma.vmem_to_hbm [thread:$0]  %s128, 128, %s3, [#allocation5]
    $region37: #{tpu_custom_call.1} parent=1 // pred_fallthru
      _
    // Predicated region
    $region38: #{tpu_custom_call.1} parent=1 // pred_check
      _
    $region39: #{tpu_custom_call.1} parent=1 // pred_check_branch
      %132 = sbr.rel (0) target = $region41
    $region40: #{tpu_custom_call.1} parent=1 // pred_region
      %133 = dma.done [#allocation5], 128
    $region41: #{tpu_custom_call.1} parent=1 // pred_fallthru
      _
    %134 = vsyncpa [#allocation4], 1
    %135 = vsyncpa [#allocation7], 1
    %136 = vsyncpa [#allocation5], 1

</llo_original>
